<compile_context>
chip_gen: v6e
topology: v6e:2x2x1
jax: 0.10.0
libtpu: 0.0.40
codegen_flags: <defaults>
</compile_context>

<pallas_src>
import functools

import jax
import jax.numpy as jnp
from jax.experimental import pallas as pl
from jax.experimental.pallas import tpu as pltpu


def _round_up(x, m):
    return ((x + m - 1) // m) * m


def _make_kernel(num_layers, bt, seq, hidden, n2, o_pad):
    R = bt * seq
    f32 = jnp.float32

    def kernel(*refs):
        layer_refs = refs[:num_layers]
        (wsq_ref, w1t_ref, b1_ref, w2t_ref, b2_ref,
         wp_ref, bp_ref) = refs[num_layers:num_layers + 7]
        out_ref = refs[num_layers + 7]
        act_dtype = layer_refs[0].dtype

        # 0/1 group matrices: row r of this tile belongs to batch element r // seq.
        # (built with mul/compare only -- no vector integer division.)
        row_g = jax.lax.broadcasted_iota(jnp.int32, (bt, R), 1)
        bat_g = jax.lax.broadcasted_iota(jnp.int32, (bt, R), 0) * seq
        pool = jnp.where((row_g >= bat_g) & (row_g < bat_g + seq),
                         1.0, 0.0).astype(act_dtype)            # (bt, R)
        row_e = jax.lax.broadcasted_iota(jnp.int32, (R, bt), 0)
        bat_e = jax.lax.broadcasted_iota(jnp.int32, (R, bt), 1) * seq
        expand = jnp.where((row_e >= bat_e) & (row_e < bat_e + seq),
                           1.0, 0.0).astype(f32)                 # (R, bt)

        # ---- squeeze linear + mean over L (heavy part on the MXU) ----------
        # wsq is pre-scaled by 1/L; the squeeze bias is folded into b1.
        wsq = wsq_ref[...]                                       # (1, D) f32
        w1t = w1t_ref[...]                                       # (N, N2) f32
        h = jnp.zeros((bt, n2), f32) + b1_ref[...]               # (bt, N2)
        for n in range(num_layers):
            # per-batch sum over the L rows, on the MXU (bf16 in, f32 acc)
            us = jnp.dot(pool, layer_refs[n][...],
                         preferred_element_type=f32)             # (bt, D)
            zc = jnp.sum(us * wsq, axis=-1, keepdims=True)       # (bt, 1)
            h = h + zc * w1t[n:n + 1, :]
        h = jnp.maximum(h, 0.0)

        # ---- gate: s = sigmoid(W2 @ relu(W1 @ z + b1) + b2) ----------------
        slog = jnp.zeros((bt, num_layers), f32) + b2_ref[...]
        w2t = w2t_ref[...]                                       # (N2, N) f32
        for j in range(n2):
            slog = slog + h[:, j:j + 1] * w2t[j:j + 1, :]
        s = jax.nn.sigmoid(slog)                                 # (bt, N)
        s_rows = jnp.dot(expand, s, preferred_element_type=f32)  # (R, N)

        # ---- weighted layer sum (f32 accumulation) -------------------------
        # TODO(synk): if a bundle dump ever shows VALU-bound on v5e, recast this
        # as an MXU dot_general contracting the layer axis.
        u_sum = jnp.zeros((R, hidden), f32)
        for n in range(num_layers):
            u_sum = u_sum + layer_refs[n][...].astype(f32) * s_rows[:, n:n + 1]

        # ---- output projection: bf16 MXU matmul, f32 accumulate, lane-dense.
        out = jnp.dot(u_sum.astype(jnp.bfloat16), wp_ref[...],
                      preferred_element_type=f32)
        out_ref[...] = (out + bp_ref[...]).astype(out_ref.dtype)

    return kernel


def _pick_bt(batch, num_layers, seq, hidden, itemsize,
             budget_bytes=24 * 1024 * 1024):
    """Largest batch tile whose double-buffered layer blocks fit the budget."""
    bt = 1
    for cand in range(1, batch + 1):
        if batch % cand:
            continue
        if 2 * num_layers * cand * seq * hidden * itemsize <= budget_bytes:
            bt = cand
    return bt


@functools.partial(jax.jit, static_argnames=("bt",))
def layers_fuser(encoder_outputs, wsq, bsq, w1, b1, w2, b2, wp, bp, *, bt=None):
    """Pallas-TPU forward of LayersFuser.

    encoder_outputs: list of (B, L, D) arrays; layer 0 only provides shapes
        (exactly like the PyTorch module).  bf16 inputs recommended.
    Weights in PyTorch nn.Linear layout:
        wsq (1, D), bsq (1,), w1 (N2, N), b1 (N2,), w2 (N, N2), b2 (N,),
        wp (O, D), bp (O,)  with N = len(encoder_outputs) - 1, N2 = N // 2.
    """
    layers = list(encoder_outputs[1:])
    num_layers = len(layers)
    B, L, D = layers[0].shape
    n2 = w1.shape[0]
    O = wp.shape[0]
    o_pad = _round_up(O, 128)

    if bt is None:
        bt = _pick_bt(B, num_layers, L, D, layers[0].dtype.itemsize)
    assert B % bt == 0, (B, bt)
    R = bt * L
    grid = (B // bt,)

    f32, bf16 = jnp.float32, jnp.bfloat16

    # ---- host-side weight prep (tiny, once per call) ------------------------
    wsq_row = wsq.astype(f32).reshape(1, D) / float(L)          # 1/L folded in
    b1_eff = (b1.astype(f32)
              + bsq.astype(f32).reshape(()) * w1.astype(f32).sum(axis=1)
              ).reshape(1, n2)                                   # squeeze bias folded in
    w1t = w1.astype(f32).T                                       # (N, N2)
    w2t = w2.astype(f32).T                                       # (N2, N)
    b2r = b2.astype(f32).reshape(1, num_layers)                  # (1, N)
    wp_pad = jnp.zeros((D, o_pad), bf16).at[:, :O].set(wp.T.astype(bf16))
    bp_pad = jnp.zeros((1, o_pad), f32).at[:, :O].set(bp.astype(f32).reshape(1, O))

    # Each layer viewed as a (B*L, D) slab -- a free reshape, NO stacked copy.
    layers2d = [x.reshape(B * L, D) for x in layers]

    kernel = _make_kernel(num_layers, bt, L, D, n2, o_pad)

    layer_spec = pl.BlockSpec((R, D), lambda b: (b, 0))
    in_specs = ([layer_spec] * num_layers + [
        pl.BlockSpec((1, D), lambda b: (0, 0)),             # wsq (scaled)
        pl.BlockSpec((num_layers, n2), lambda b: (0, 0)),   # W1.T
        pl.BlockSpec((1, n2), lambda b: (0, 0)),            # b1 (+ folded bsq)
        pl.BlockSpec((n2, num_layers), lambda b: (0, 0)),   # W2.T
        pl.BlockSpec((1, num_layers), lambda b: (0, 0)),    # b2
        pl.BlockSpec((D, o_pad), lambda b: (0, 0)),         # Wp.T (padded, bf16)
        pl.BlockSpec((1, o_pad), lambda b: (0, 0)),         # bp (padded)
    ])

    act_bytes = sum(int(x.size) * x.dtype.itemsize for x in layers2d)
    w_bytes = sum(int(x.size) * x.dtype.itemsize
                  for x in (wsq_row, w1t, b1_eff, w2t, b2r, wp_pad, bp_pad))
    cost = pl.CostEstimate(
        flops=2 * B * L * D * o_pad + 4 * B * num_layers * L * D,
        transcendentals=B * num_layers,
        bytes_accessed=act_bytes + w_bytes + B * L * o_pad * 4,
    )

    out = pl.pallas_call(
        kernel,
        out_shape=jax.ShapeDtypeStruct((B * L, o_pad), f32),
        grid_spec=pltpu.PrefetchScalarGridSpec(
            num_scalar_prefetch=0,
            grid=grid,
            in_specs=in_specs,
            out_specs=pl.BlockSpec((R, o_pad), lambda b: (b, 0)),
        ),
        compiler_params=pltpu.CompilerParams(
            dimension_semantics=("parallel",),
            vmem_limit_bytes=64 * 1024 * 1024,
        ),
        cost_estimate=cost,
    )(*layers2d, wsq_row, w1t, b1_eff, w2t, b2r, wp_pad, bp_pad)

    out = out.reshape(B, L, o_pad)
    return out[..., :O]


def _init_params(key, num_layers, hidden_size, output_size):
    """Deterministic PyTorch-Linear-style uniform init (native torch layout)."""
    n2 = num_layers // 2
    ks = jax.random.split(key, 8)

    def u(k, shape, fan_in):
        bound = 1.0 / (fan_in ** 0.5)
        return jax.random.uniform(k, shape, jnp.float32, -bound, bound)

    wsq = u(ks[0], (1, hidden_size), hidden_size)          # squeeze.weight
    bsq = u(ks[1], (1,), hidden_size)                      # squeeze.bias
    w1 = u(ks[2], (n2, num_layers), num_layers)            # W1.weight
    b1 = u(ks[3], (n2,), num_layers)                       # W1.bias
    w2 = u(ks[4], (num_layers, n2), n2)                    # W2.weight
    b2 = u(ks[5], (num_layers,), n2)                       # W2.bias
    wp = u(ks[6], (output_size, hidden_size), hidden_size)  # output_projection.weight
    bp = u(ks[7], (output_size,), hidden_size)              # output_projection.bias
    return wsq, bsq, w1, b1, w2, b2, wp, bp


def _reference(encoder_outputs, wsq, bsq, w1, b1, w2, b2, wp, bp):
    """Pure-JAX f32 mirror of the PyTorch forward for verification."""
    U = jnp.stack([x.astype(jnp.float32) for x in encoder_outputs[1:]], axis=1)
    Z = jnp.einsum('bnld,d->bnl', U, wsq.reshape(-1)) + bsq[0]
    Z = Z.mean(axis=2)
    h = jax.nn.relu(Z @ w1.T + b1)
    s = jax.nn.sigmoid(h @ w2.T + b2)
    U_sum = (U * s[:, :, None, None]).sum(axis=1)
    return U_sum @ wp.T + bp


if __name__ == "__main__":
    # Small, forward-consistent shapes.
    B, L, D = 4, 8, 32
    num_layers = 4          # => len(encoder_outputs) == num_layers + 1
    output_size = 32

    key = jax.random.PRNGKey(0)
    k_params, k_data = jax.random.split(key)
    params = _init_params(k_params, num_layers, D, output_size)

    data_keys = jax.random.split(k_data, num_layers + 1)
    # Encoder outputs in bf16 (the bandwidth-optimal path); layer 0 only sets shapes.
    encoder_outputs = [
        jax.random.normal(k, (B, L, D), jnp.bfloat16) for k in data_keys
    ]

    out = layers_fuser(encoder_outputs, *params, bt=2)   # grid=(2,), 2 batch elems/step
    out = jax.block_until_ready(out)

    ref = _reference(encoder_outputs, *params)
    assert out.shape == (B, L, output_size), out.shape
    max_err = jnp.max(jnp.abs(out - ref))
    assert jnp.allclose(out, ref, atol=3e-2, rtol=3e-2), f"max abs err {max_err}"

    print("KERNEL_OK")
</pallas_src>

<mosaic_0001>
module attributes {stable_mosaic.version = 11 : i64} {
  func.func @kernel(%arg0: i32, %arg1: memref<16x32xbf16, #tpu.memory_space<vmem>>, %arg2: memref<16x32xbf16, #tpu.memory_space<vmem>>, %arg3: memref<16x32xbf16, #tpu.memory_space<vmem>>, %arg4: memref<16x32xbf16, #tpu.memory_space<vmem>>, %arg5: memref<1x32xf32, #tpu.memory_space<vmem>>, %arg6: memref<4x2xf32, #tpu.memory_space<vmem>>, %arg7: memref<1x2xf32, #tpu.memory_space<vmem>>, %arg8: memref<2x4xf32, #tpu.memory_space<vmem>>, %arg9: memref<1x4xf32, #tpu.memory_space<vmem>>, %arg10: memref<32x128xbf16, #tpu.memory_space<vmem>>, %arg11: memref<1x128xf32, #tpu.memory_space<vmem>>, %arg12: memref<16x128xf32, #tpu.memory_space<vmem>>) attributes {dimension_semantics = [#tpu.dimension_semantics<parallel>], iteration_bounds = array<i64: 2>, scalar_prefetch = 0 : i64, scratch_operands = 0 : i64, tpu.core_type = #tpu.core_type<tc>, window_params = [{transform_indices = @transform_0, window_bounds = array<i64: 16, 32>}, {transform_indices = @transform_1, window_bounds = array<i64: 16, 32>}, {transform_indices = @transform_2, window_bounds = array<i64: 16, 32>}, {transform_indices = @transform_3, window_bounds = array<i64: 16, 32>}, {pipeline_mode = #tpu.pipeline_mode<synchronous>, transform_indices = @transform_4, window_bounds = array<i64: 1, 32>}, {pipeline_mode = #tpu.pipeline_mode<synchronous>, transform_indices = @transform_5, window_bounds = array<i64: 4, 2>}, {pipeline_mode = #tpu.pipeline_mode<synchronous>, transform_indices = @transform_6, window_bounds = array<i64: 1, 2>}, {pipeline_mode = #tpu.pipeline_mode<synchronous>, transform_indices = @transform_7, window_bounds = array<i64: 2, 4>}, {pipeline_mode = #tpu.pipeline_mode<synchronous>, transform_indices = @transform_8, window_bounds = array<i64: 1, 4>}, {pipeline_mode = #tpu.pipeline_mode<synchronous>, transform_indices = @transform_9, window_bounds = array<i64: 32, 128>}, {pipeline_mode = #tpu.pipeline_mode<synchronous>, transform_indices = @transform_10, window_bounds = array<i64: 1, 128>}, {transform_indices = @transform_11, window_bounds = array<i64: 16, 128>}]} {
    %0 = tpu.iota {dimensions = array<i32: 1>} : vector<2x16xi32>
    %1 = tpu.iota {dimensions = array<i32: 0>} : vector<2x16xi32>
    %c8_i32 = arith.constant 8 : i32
    %2 = vector.broadcast %c8_i32 : i32 to vector<2x16xi32>
    %3 = arith.muli %1, %2 : vector<2x16xi32>
    %4 = arith.cmpi sge, %0, %3 : vector<2x16xi32>
    %c8_i32_0 = arith.constant 8 : i32
    %5 = vector.broadcast %c8_i32_0 : i32 to vector<2x16xi32>
    %6 = arith.addi %3, %5 : vector<2x16xi32>
    %7 = arith.cmpi slt, %0, %6 : vector<2x16xi32>
    %8 = arith.andi %4, %7 : vector<2x16xi1>
    %cst = arith.constant 1.000000e+00 : f32
    %cst_1 = arith.constant 0.000000e+00 : f32
    %9 = vector.broadcast %cst : f32 to vector<2x16xf32>
    %10 = vector.broadcast %cst_1 : f32 to vector<2x16xf32>
    %11 = arith.select %8, %9, %10 : vector<2x16xi1>, vector<2x16xf32>
    %12 = arith.truncf %11 : vector<2x16xf32> to vector<2x16xbf16>
    %13 = tpu.iota {dimensions = array<i32: 0>} : vector<16x2xi32>
    %14 = tpu.iota {dimensions = array<i32: 1>} : vector<16x2xi32>
    %c8_i32_2 = arith.constant 8 : i32
    %15 = vector.broadcast %c8_i32_2 : i32 to vector<16x2xi32>
    %16 = arith.muli %14, %15 : vector<16x2xi32>
    %17 = arith.cmpi sge, %13, %16 : vector<16x2xi32>
    %c8_i32_3 = arith.constant 8 : i32
    %18 = vector.broadcast %c8_i32_3 : i32 to vector<16x2xi32>
    %19 = arith.addi %16, %18 : vector<16x2xi32>
    %20 = arith.cmpi slt, %13, %19 : vector<16x2xi32>
    %21 = arith.andi %17, %20 : vector<16x2xi1>
    %cst_4 = arith.constant 1.000000e+00 : f32
    %cst_5 = arith.constant 0.000000e+00 : f32
    %22 = vector.broadcast %cst_4 : f32 to vector<16x2xf32>
    %23 = vector.broadcast %cst_5 : f32 to vector<16x2xf32>
    %24 = arith.select %21, %22, %23 : vector<16x2xi1>, vector<16x2xf32>
    %c0 = arith.constant 0 : index
    %c0_6 = arith.constant 0 : index
    %25 = vector.load %arg5[%c0, %c0_6] : memref<1x32xf32, #tpu.memory_space<vmem>>, vector<1x32xf32>
    %c0_7 = arith.constant 0 : index
    %c0_8 = arith.constant 0 : index
    %26 = vector.load %arg6[%c0_7, %c0_8] : memref<4x2xf32, #tpu.memory_space<vmem>>, vector<4x2xf32>
    %cst_9 = arith.constant 0.000000e+00 : f32
    %27 = vector.broadcast %cst_9 : f32 to vector<2x2xf32>
    %c0_10 = arith.constant 0 : index
    %c0_11 = arith.constant 0 : index
    %28 = vector.load %arg7[%c0_10, %c0_11] : memref<1x2xf32, #tpu.memory_space<vmem>>, vector<1x2xf32>
    %29 = vector.broadcast %28 : vector<1x2xf32> to vector<2x2xf32>
    %30 = arith.addf %27, %29 : vector<2x2xf32>
    %c0_12 = arith.constant 0 : index
    %c0_13 = arith.constant 0 : index
    %31 = vector.load %arg1[%c0_12, %c0_13] : memref<16x32xbf16, #tpu.memory_space<vmem>>, vector<16x32xbf16>
    %cst_14 = arith.constant dense<0.000000e+00> : vector<2x32xf32>
    %32 = tpu.matmul %12, %31, %cst_14 {dimension_numbers = #tpu.dot_dimension_numbers<[1], [0], [0], [1], [0, 0, 1, 1], [], []>} : vector<2x16xbf16>, vector<16x32xbf16>, vector<2x32xf32> -> vector<2x32xf32>
    %33 = vector.broadcast %25 : vector<1x32xf32> to vector<2x32xf32>
    %34 = arith.mulf %32, %33 : vector<2x32xf32>
    %cst_15 = arith.constant dense<0.000000e+00> : vector<2xf32>
    %35 = vector.multi_reduction <add>, %34, %cst_15 [1] : vector<2x32xf32> to vector<2xf32>
    %36 = vector.shape_cast %35 : vector<2xf32> to vector<2x1xf32>
    %37 = vector.extract_strided_slice %26 {offsets = [0, 0], sizes = [1, 2], strides = [1, 1]} : vector<4x2xf32> to vector<1x2xf32>
    %38 = vector.broadcast %36 : vector<2x1xf32> to vector<2x2xf32>
    %39 = vector.broadcast %37 : vector<1x2xf32> to vector<2x2xf32>
    %40 = arith.mulf %38, %39 : vector<2x2xf32>
    %41 = arith.addf %30, %40 : vector<2x2xf32>
    %c0_16 = arith.constant 0 : index
    %c0_17 = arith.constant 0 : index
    %42 = vector.load %arg2[%c0_16, %c0_17] : memref<16x32xbf16, #tpu.memory_space<vmem>>, vector<16x32xbf16>
    %cst_18 = arith.constant dense<0.000000e+00> : vector<2x32xf32>
    %43 = tpu.matmul %12, %42, %cst_18 {dimension_numbers = #tpu.dot_dimension_numbers<[1], [0], [0], [1], [0, 0, 1, 1], [], []>} : vector<2x16xbf16>, vector<16x32xbf16>, vector<2x32xf32> -> vector<2x32xf32>
    %44 = vector.broadcast %25 : vector<1x32xf32> to vector<2x32xf32>
    %45 = arith.mulf %43, %44 : vector<2x32xf32>
    %cst_19 = arith.constant dense<0.000000e+00> : vector<2xf32>
    %46 = vector.multi_reduction <add>, %45, %cst_19 [1] : vector<2x32xf32> to vector<2xf32>
    %47 = vector.shape_cast %46 : vector<2xf32> to vector<2x1xf32>
    %48 = vector.extract_strided_slice %26 {offsets = [1, 0], sizes = [1, 2], strides = [1, 1]} : vector<4x2xf32> to vector<1x2xf32>
    %49 = vector.broadcast %47 : vector<2x1xf32> to vector<2x2xf32>
    %50 = vector.broadcast %48 : vector<1x2xf32> to vector<2x2xf32>
    %51 = arith.mulf %49, %50 : vector<2x2xf32>
    %52 = arith.addf %41, %51 : vector<2x2xf32>
    %c0_20 = arith.constant 0 : index
    %c0_21 = arith.constant 0 : index
    %53 = vector.load %arg3[%c0_20, %c0_21] : memref<16x32xbf16, #tpu.memory_space<vmem>>, vector<16x32xbf16>
    %cst_22 = arith.constant dense<0.000000e+00> : vector<2x32xf32>
    %54 = tpu.matmul %12, %53, %cst_22 {dimension_numbers = #tpu.dot_dimension_numbers<[1], [0], [0], [1], [0, 0, 1, 1], [], []>} : vector<2x16xbf16>, vector<16x32xbf16>, vector<2x32xf32> -> vector<2x32xf32>
    %55 = vector.broadcast %25 : vector<1x32xf32> to vector<2x32xf32>
    %56 = arith.mulf %54, %55 : vector<2x32xf32>
    %cst_23 = arith.constant dense<0.000000e+00> : vector<2xf32>
    %57 = vector.multi_reduction <add>, %56, %cst_23 [1] : vector<2x32xf32> to vector<2xf32>
    %58 = vector.shape_cast %57 : vector<2xf32> to vector<2x1xf32>
    %59 = vector.extract_strided_slice %26 {offsets = [2, 0], sizes = [1, 2], strides = [1, 1]} : vector<4x2xf32> to vector<1x2xf32>
    %60 = vector.broadcast %58 : vector<2x1xf32> to vector<2x2xf32>
    %61 = vector.broadcast %59 : vector<1x2xf32> to vector<2x2xf32>
    %62 = arith.mulf %60, %61 : vector<2x2xf32>
    %63 = arith.addf %52, %62 : vector<2x2xf32>
    %c0_24 = arith.constant 0 : index
    %c0_25 = arith.constant 0 : index
    %64 = vector.load %arg4[%c0_24, %c0_25] : memref<16x32xbf16, #tpu.memory_space<vmem>>, vector<16x32xbf16>
    %cst_26 = arith.constant dense<0.000000e+00> : vector<2x32xf32>
    %65 = tpu.matmul %12, %64, %cst_26 {dimension_numbers = #tpu.dot_dimension_numbers<[1], [0], [0], [1], [0, 0, 1, 1], [], []>} : vector<2x16xbf16>, vector<16x32xbf16>, vector<2x32xf32> -> vector<2x32xf32>
    %66 = vector.broadcast %25 : vector<1x32xf32> to vector<2x32xf32>
    %67 = arith.mulf %65, %66 : vector<2x32xf32>
    %cst_27 = arith.constant dense<0.000000e+00> : vector<2xf32>
    %68 = vector.multi_reduction <add>, %67, %cst_27 [1] : vector<2x32xf32> to vector<2xf32>
    %69 = vector.shape_cast %68 : vector<2xf32> to vector<2x1xf32>
    %70 = vector.extract_strided_slice %26 {offsets = [3, 0], sizes = [1, 2], strides = [1, 1]} : vector<4x2xf32> to vector<1x2xf32>
    %71 = vector.broadcast %69 : vector<2x1xf32> to vector<2x2xf32>
    %72 = vector.broadcast %70 : vector<1x2xf32> to vector<2x2xf32>
    %73 = arith.mulf %71, %72 : vector<2x2xf32>
    %74 = arith.addf %63, %73 : vector<2x2xf32>
    %cst_28 = arith.constant 0.000000e+00 : f32
    %75 = vector.broadcast %cst_28 : f32 to vector<2x2xf32>
    %76 = arith.maximumf %74, %75 : vector<2x2xf32>
    %cst_29 = arith.constant 0.000000e+00 : f32
    %77 = vector.broadcast %cst_29 : f32 to vector<2x4xf32>
    %c0_30 = arith.constant 0 : index
    %c0_31 = arith.constant 0 : index
    %78 = vector.load %arg9[%c0_30, %c0_31] : memref<1x4xf32, #tpu.memory_space<vmem>>, vector<1x4xf32>
    %79 = vector.broadcast %78 : vector<1x4xf32> to vector<2x4xf32>
    %80 = arith.addf %77, %79 : vector<2x4xf32>
    %c0_32 = arith.constant 0 : index
    %c0_33 = arith.constant 0 : index
    %81 = vector.load %arg8[%c0_32, %c0_33] : memref<2x4xf32, #tpu.memory_space<vmem>>, vector<2x4xf32>
    %82 = vector.extract_strided_slice %76 {offsets = [0, 0], sizes = [2, 1], strides = [1, 1]} : vector<2x2xf32> to vector<2x1xf32>
    %83 = vector.extract_strided_slice %81 {offsets = [0, 0], sizes = [1, 4], strides = [1, 1]} : vector<2x4xf32> to vector<1x4xf32>
    %84 = vector.broadcast %82 : vector<2x1xf32> to vector<2x4xf32>
    %85 = vector.broadcast %83 : vector<1x4xf32> to vector<2x4xf32>
    %86 = arith.mulf %84, %85 : vector<2x4xf32>
    %87 = arith.addf %80, %86 : vector<2x4xf32>
    %88 = vector.extract_strided_slice %76 {offsets = [0, 1], sizes = [2, 1], strides = [1, 1]} : vector<2x2xf32> to vector<2x1xf32>
    %89 = vector.extract_strided_slice %81 {offsets = [1, 0], sizes = [1, 4], strides = [1, 1]} : vector<2x4xf32> to vector<1x4xf32>
    %90 = vector.broadcast %88 : vector<2x1xf32> to vector<2x4xf32>
    %91 = vector.broadcast %89 : vector<1x4xf32> to vector<2x4xf32>
    %92 = arith.mulf %90, %91 : vector<2x4xf32>
    %93 = arith.addf %87, %92 : vector<2x4xf32>
    %94 = arith.negf %93 : vector<2x4xf32>
    %95 = math.exp %94 : vector<2x4xf32>
    %cst_34 = arith.constant 1.000000e+00 : f32
    %96 = vector.broadcast %cst_34 : f32 to vector<2x4xf32>
    %97 = arith.addf %96, %95 : vector<2x4xf32>
    %98 = arith.divf %96, %97 : vector<2x4xf32>
    %cst_35 = arith.constant dense<0.000000e+00> : vector<16x4xf32>
    %99 = tpu.matmul %24, %98, %cst_35 {dimension_numbers = #tpu.dot_dimension_numbers<[1], [0], [0], [1], [0, 0, 1, 1], [], []>} : vector<16x2xf32>, vector<2x4xf32>, vector<16x4xf32> -> vector<16x4xf32>
    %cst_36 = arith.constant 0.000000e+00 : f32
    %100 = vector.broadcast %cst_36 : f32 to vector<16x32xf32>
    %c0_37 = arith.constant 0 : index
    %c0_38 = arith.constant 0 : index
    %101 = vector.load %arg1[%c0_37, %c0_38] : memref<16x32xbf16, #tpu.memory_space<vmem>>, vector<16x32xbf16>
    %102 = arith.extf %101 : vector<16x32xbf16> to vector<16x32xf32>
    %103 = vector.extract_strided_slice %99 {offsets = [0, 0], sizes = [16, 1], strides = [1, 1]} : vector<16x4xf32> to vector<16x1xf32>
    %104 = vector.broadcast %103 : vector<16x1xf32> to vector<16x32xf32>
    %105 = arith.mulf %102, %104 : vector<16x32xf32>
    %106 = arith.addf %100, %105 : vector<16x32xf32>
    %c0_39 = arith.constant 0 : index
    %c0_40 = arith.constant 0 : index
    %107 = vector.load %arg2[%c0_39, %c0_40] : memref<16x32xbf16, #tpu.memory_space<vmem>>, vector<16x32xbf16>
    %108 = arith.extf %107 : vector<16x32xbf16> to vector<16x32xf32>
    %109 = vector.extract_strided_slice %99 {offsets = [0, 1], sizes = [16, 1], strides = [1, 1]} : vector<16x4xf32> to vector<16x1xf32>
    %110 = vector.broadcast %109 : vector<16x1xf32> to vector<16x32xf32>
    %111 = arith.mulf %108, %110 : vector<16x32xf32>
    %112 = arith.addf %106, %111 : vector<16x32xf32>
    %c0_41 = arith.constant 0 : index
    %c0_42 = arith.constant 0 : index
    %113 = vector.load %arg3[%c0_41, %c0_42] : memref<16x32xbf16, #tpu.memory_space<vmem>>, vector<16x32xbf16>
    %114 = arith.extf %113 : vector<16x32xbf16> to vector<16x32xf32>
    %115 = vector.extract_strided_slice %99 {offsets = [0, 2], sizes = [16, 1], strides = [1, 1]} : vector<16x4xf32> to vector<16x1xf32>
    %116 = vector.broadcast %115 : vector<16x1xf32> to vector<16x32xf32>
    %117 = arith.mulf %114, %116 : vector<16x32xf32>
    %118 = arith.addf %112, %117 : vector<16x32xf32>
    %c0_43 = arith.constant 0 : index
    %c0_44 = arith.constant 0 : index
    %119 = vector.load %arg4[%c0_43, %c0_44] : memref<16x32xbf16, #tpu.memory_space<vmem>>, vector<16x32xbf16>
    %120 = arith.extf %119 : vector<16x32xbf16> to vector<16x32xf32>
    %121 = vector.extract_strided_slice %99 {offsets = [0, 3], sizes = [16, 1], strides = [1, 1]} : vector<16x4xf32> to vector<16x1xf32>
    %122 = vector.broadcast %121 : vector<16x1xf32> to vector<16x32xf32>
    %123 = arith.mulf %120, %122 : vector<16x32xf32>
    %124 = arith.addf %118, %123 : vector<16x32xf32>
    %125 = arith.truncf %124 : vector<16x32xf32> to vector<16x32xbf16>
    %c0_45 = arith.constant 0 : index
    %c0_46 = arith.constant 0 : index
    %126 = vector.load %arg10[%c0_45, %c0_46] : memref<32x128xbf16, #tpu.memory_space<vmem>>, vector<32x128xbf16>
    %cst_47 = arith.constant dense<0.000000e+00> : vector<16x128xf32>
    %127 = tpu.matmul %125, %126, %cst_47 {dimension_numbers = #tpu.dot_dimension_numbers<[1], [0], [0], [1], [0, 0, 1, 1], [], []>} : vector<16x32xbf16>, vector<32x128xbf16>, vector<16x128xf32> -> vector<16x128xf32>
    %c0_48 = arith.constant 0 : index
    %c0_49 = arith.constant 0 : index
    %128 = vector.load %arg11[%c0_48, %c0_49] : memref<1x128xf32, #tpu.memory_space<vmem>>, vector<1x128xf32>
    %129 = vector.broadcast %128 : vector<1x128xf32> to vector<16x128xf32>
    %130 = arith.addf %127, %129 : vector<16x128xf32>
    %c0_50 = arith.constant 0 : index
    %c0_51 = arith.constant 0 : index
    %131 = vector.load %arg12[%c0_50, %c0_51] : memref<16x128xf32, #tpu.memory_space<vmem>>, vector<16x128xf32>
    tpu.vector_store %arg12[%c0_50, %c0_51], %130 {strides = array<i32>} : memref<16x128xf32, #tpu.memory_space<vmem>>, vector<16x128xf32>,
    return
  }
  func.func @transform_0(%arg0: i32) -> (i32, i32) {
    %c0_i32 = arith.constant 0 : i32
    %c0_i32_0 = arith.constant 0 : i32
    return %arg0, %c0_i32 : i32, i32
  }
  func.func @transform_1(%arg0: i32) -> (i32, i32) {
    %c0_i32 = arith.constant 0 : i32
    %c0_i32_0 = arith.constant 0 : i32
    return %arg0, %c0_i32 : i32, i32
  }
  func.func @transform_2(%arg0: i32) -> (i32, i32) {
    %c0_i32 = arith.constant 0 : i32
    %c0_i32_0 = arith.constant 0 : i32
    return %arg0, %c0_i32 : i32, i32
  }
  func.func @transform_3(%arg0: i32) -> (i32, i32) {
    %c0_i32 = arith.constant 0 : i32
    %c0_i32_0 = arith.constant 0 : i32
    return %arg0, %c0_i32 : i32, i32
  }
  func.func @transform_4(%arg0: i32) -> (i32, i32) {
    %c0_i32 = arith.constant 0 : i32
    %c0_i32_0 = arith.constant 0 : i32
    %c0_i32_1 = arith.constant 0 : i32
    return %c0_i32, %c0_i32_0 : i32, i32
  }
  func.func @transform_5(%arg0: i32) -> (i32, i32) {
    %c0_i32 = arith.constant 0 : i32
    %c0_i32_0 = arith.constant 0 : i32
    %c0_i32_1 = arith.constant 0 : i32
    return %c0_i32, %c0_i32_0 : i32, i32
  }
  func.func @transform_6(%arg0: i32) -> (i32, i32) {
    %c0_i32 = arith.constant 0 : i32
    %c0_i32_0 = arith.constant 0 : i32
    %c0_i32_1 = arith.constant 0 : i32
    return %c0_i32, %c0_i32_0 : i32, i32
  }
  func.func @transform_7(%arg0: i32) -> (i32, i32) {
    %c0_i32 = arith.constant 0 : i32
    %c0_i32_0 = arith.constant 0 : i32
    %c0_i32_1 = arith.constant 0 : i32
    return %c0_i32, %c0_i32_0 : i32, i32
  }
  func.func @transform_8(%arg0: i32) -> (i32, i32) {
    %c0_i32 = arith.constant 0 : i32
    %c0_i32_0 = arith.constant 0 : i32
    %c0_i32_1 = arith.constant 0 : i32
    return %c0_i32, %c0_i32_0 : i32, i32
  }
  func.func @transform_9(%arg0: i32) -> (i32, i32) {
    %c0_i32 = arith.constant 0 : i32
    %c0_i32_0 = arith.constant 0 : i32
    %c0_i32_1 = arith.constant 0 : i32
    return %c0_i32, %c0_i32_0 : i32, i32
  }
  func.func @transform_10(%arg0: i32) -> (i32, i32) {
    %c0_i32 = arith.constant 0 : i32
    %c0_i32_0 = arith.constant 0 : i32
    %c0_i32_1 = arith.constant 0 : i32
    return %c0_i32, %c0_i32_0 : i32, i32
  }
  func.func @transform_11(%arg0: i32) -> (i32, i32) {
    %c0_i32 = arith.constant 0 : i32
    %c0_i32_0 = arith.constant 0 : i32
    return %arg0, %c0_i32 : i32, i32
  }
}

</mosaic_0001>

<llo_original>
// kernel: layers_fuser.1
$region0: #{layers_fuser.1}
  #allocation0 [shape = 'u32[]', space=smem, size = 0x4, offset = 0x4, fixed_abs, tag = 'smem constant byte address 0x4 - core index']
  #allocation1 [shape = 'u32[144,128]{1,0:T(1,128)}', space=vmem, size = 0x12000, scoped, tag = 'internal scratch']
  %s0 = inlined_call_operand.vmem [shape: bf16[32,32], index: 0, kind: input, shape index: {}]
  %s1 = inlined_call_operand.vmem [shape: bf16[32,32], index: 1, kind: input, shape index: {}]
  %s2 = inlined_call_operand.vmem [shape: bf16[32,32], index: 2, kind: input, shape index: {}]
  %s3 = inlined_call_operand.vmem [shape: bf16[32,32], index: 3, kind: input, shape index: {}]
  %s4 = inlined_call_operand.vmem [shape: f32[1,32], index: 4, kind: input, shape index: {}]
  %s5 = inlined_call_operand.vmem [shape: f32[4,2], index: 5, kind: input, shape index: {}]
  %s6 = inlined_call_operand.vmem [shape: f32[1,2], index: 6, kind: input, shape index: {}]
  %s7 = inlined_call_operand.vmem [shape: f32[2,4], index: 7, kind: input, shape index: {}]
  %s8 = inlined_call_operand.vmem [shape: f32[1,4], index: 8, kind: input, shape index: {}]
  %s9 = inlined_call_operand.vmem [shape: bf16[32,128], index: 9, kind: input, shape index: {}]
  %s10 = inlined_call_operand.vmem [shape: f32[1,128], index: 10, kind: input, shape index: {}]
  %s11 = inlined_call_operand.hbm [shape: f32[32,128], index: 11, kind: output, shape index: {}]
  %s12 = sld [smem:[#allocation0]]
  $region77: #{layers_fuser.1} parent=0
    _
  %s14 = ssub.s32 1, %s12
  %s15 = scalar_select 0, %s14, %s12
  $region1: #{layers_fuser.1} parent=0
    #allocation2 [shape = 'u8[16384]{0}', space=vmem, size = 0x4000, scoped, tag = 'output window, operand 0']
    #allocation3 [shape = 's32[2]{0}', space=sflag, size = 0x8, scoped, tag = 'scoped memory for layers_fuser.1']
    %16 = vsyncpa [#allocation3], 0
    %s17 = scalar_lea.sflag [#allocation3], 1
    %18 = vsyncpa %s17, 0
    loop: start=0, step=1, limit=4
    $region2: #{layers_fuser.1} parent=1 // loop_pre_header
      _
    $region3: #{layers_fuser.1} parent=1 // loop_header
      %s20 = sphi 0, %s24
      %p21 = scmp.ge.s32.totalorder %s20, 4
      %s30 = sphi 0, %s32
      %s33 = sphi 0, %s30
      %s34 = sphi 0, %s33
      %s50 = sphi 0, %s34
      %s56 = sphi 0, %s58
      %s59 = sphi 0, %s56
      %s60 = sphi 0, %s59
      %s76 = sphi 0, %s60
      %s82 = sphi 0, %s84
      %s85 = sphi 0, %s82
      %s86 = sphi 0, %s85
      %s102 = sphi 0, %s86
      %s108 = sphi 0, %s110
      %s111 = sphi 0, %s108
      %s112 = sphi 0, %s111
      %s128 = sphi 0, %s112
      %s132 = sphi 0, %s132
      %s134 = sphi 0, %s132
      %s135 = sphi 0, %s134
      %s149 = sphi 0, %s135
      %s153 = sphi 0, %s153
      %s155 = sphi 0, %s153
      %s156 = sphi 0, %s155
      %s170 = sphi 0, %s156
      %s174 = sphi 0, %s174
      %s176 = sphi 0, %s174
      %s177 = sphi 0, %s176
      %s191 = sphi 0, %s177
      %s195 = sphi 0, %s195
      %s197 = sphi 0, %s195
      %s198 = sphi 0, %s197
      %s212 = sphi 0, %s198
      %s216 = sphi 0, %s216
      %s218 = sphi 0, %s216
      %s219 = sphi 0, %s218
      %s233 = sphi 0, %s219
      %s237 = sphi 0, %s237
      %s239 = sphi 0, %s237
      %s240 = sphi 0, %s239
      %s254 = sphi 0, %s240
      %s258 = sphi 0, %s258
      %s260 = sphi 0, %s258
      %s261 = sphi 0, %s260
      %s275 = sphi 0, %s261
      %s281 = sphi 0, %s283
      %s284 = sphi 0, %s281
      %s285 = sphi 0, %s284
      %s301 = sphi 0, %s285
    $region4: #{layers_fuser.1} parent=1 // loop_header_branch
      %23 = sbr.rel (%p21) target = $region8
    $region5: #{layers_fuser.1} parent=1 // loop_body
      %s25 = ssub.s32 %s20, 1
      %s26 = ssub.s32 %s20, 2
      %s27 = sadd.s32 %s20, 1
      %s28 = ssub.s32 %s20, %s27
      %p29 = scmp.eq.s32.totalorder %s28, 0
      %s31 = sadd.s32 %s30, 1
      %s32 = scalar_select %p29, %s30, %s31
      %p35 = pneg %p29
      %p36 = scmp.eq.s32.totalorder %s20, 1
      %p37 = por %p35, %p36
      %p38 = scmp.ne.s32.totalorder %s30, %s33
      %p39 = scmp.eq.s32.totalorder %s20, 0
      %p40 = por %p38, %p39
      %p41 = scmp.ne.s32.totalorder %s30, %s33
      %p42 = scmp.eq.s32.totalorder %s25, 1
      %p43 = por %p41, %p42
      %p44 = scmp.ne.s32.totalorder %s33, %s34
      %p45 = scmp.eq.s32.totalorder %s25, 0
      %p46 = por %p44, %p45
      %p47 = scmp.ne.s32.totalorder %s33, %s34
      %p48 = scmp.eq.s32.totalorder %s26, 1
      %p49 = por %p47, %p48
      %p51 = scmp.ne.s32.totalorder %s34, %s50
      %p52 = scmp.eq.s32.totalorder %s26, 0
      %p53 = por %p51, %p52
      %s54 = ssub.s32 %s20, %s27
      %p55 = scmp.eq.s32.totalorder %s54, 0
      %s57 = sadd.s32 %s56, 1
      %s58 = scalar_select %p55, %s56, %s57
      %p61 = pneg %p55
      %p62 = scmp.eq.s32.totalorder %s20, 1
      %p63 = por %p61, %p62
      %p64 = scmp.ne.s32.totalorder %s56, %s59
      %p65 = scmp.eq.s32.totalorder %s20, 0
      %p66 = por %p64, %p65
      %p67 = scmp.ne.s32.totalorder %s56, %s59
      %p68 = scmp.eq.s32.totalorder %s25, 1
      %p69 = por %p67, %p68
      %p70 = scmp.ne.s32.totalorder %s59, %s60
      %p71 = scmp.eq.s32.totalorder %s25, 0
      %p72 = por %p70, %p71
      %p73 = scmp.ne.s32.totalorder %s59, %s60
      %p74 = scmp.eq.s32.totalorder %s26, 1
      %p75 = por %p73, %p74
      %p77 = scmp.ne.s32.totalorder %s60, %s76
      %p78 = scmp.eq.s32.totalorder %s26, 0
      %p79 = por %p77, %p78
      %s80 = ssub.s32 %s20, %s27
      %p81 = scmp.eq.s32.totalorder %s80, 0
      %s83 = sadd.s32 %s82, 1
      %s84 = scalar_select %p81, %s82, %s83
      %p87 = pneg %p81
      %p88 = scmp.eq.s32.totalorder %s20, 1
      %p89 = por %p87, %p88
      %p90 = scmp.ne.s32.totalorder %s82, %s85
      %p91 = scmp.eq.s32.totalorder %s20, 0
      %p92 = por %p90, %p91
      %p93 = scmp.ne.s32.totalorder %s82, %s85
      %p94 = scmp.eq.s32.totalorder %s25, 1
      %p95 = por %p93, %p94
      %p96 = scmp.ne.s32.totalorder %s85, %s86
      %p97 = scmp.eq.s32.totalorder %s25, 0
      %p98 = por %p96, %p97
      %p99 = scmp.ne.s32.totalorder %s85, %s86
      %p100 = scmp.eq.s32.totalorder %s26, 1
      %p101 = por %p99, %p100
      %p103 = scmp.ne.s32.totalorder %s86, %s102
      %p104 = scmp.eq.s32.totalorder %s26, 0
      %p105 = por %p103, %p104
      %s106 = ssub.s32 %s20, %s27
      %p107 = scmp.eq.s32.totalorder %s106, 0
      %s109 = sadd.s32 %s108, 1
      %s110 = scalar_select %p107, %s108, %s109
      %p113 = pneg %p107
      %p114 = scmp.eq.s32.totalorder %s20, 1
      %p115 = por %p113, %p114
      %p116 = scmp.ne.s32.totalorder %s108, %s111
      %p117 = scmp.eq.s32.totalorder %s20, 0
      %p118 = por %p116, %p117
      %p119 = scmp.ne.s32.totalorder %s108, %s111
      %p120 = scmp.eq.s32.totalorder %s25, 1
      %p121 = por %p119, %p120
      %p122 = scmp.ne.s32.totalorder %s111, %s112
      %p123 = scmp.eq.s32.totalorder %s25, 0
      %p124 = por %p122, %p123
      %p125 = scmp.ne.s32.totalorder %s111, %s112
      %p126 = scmp.eq.s32.totalorder %s26, 1
      %p127 = por %p125, %p126
      %p129 = scmp.ne.s32.totalorder %s112, %s128
      %p130 = scmp.eq.s32.totalorder %s26, 0
      %p131 = por %p129, %p130
      %s133 = sadd.s32 %s132, 1
      %p136 = scmp.eq.s32.totalorder %s20, 1
      %p137 = scmp.ne.s32.totalorder %s132, %s134
      %p138 = scmp.eq.s32.totalorder %s20, 0
      %p139 = por %p137, %p138
      %p140 = scmp.ne.s32.totalorder %s132, %s134
      %p141 = scmp.eq.s32.totalorder %s25, 1
      %p142 = por %p140, %p141
      %p143 = scmp.ne.s32.totalorder %s134, %s135
      %p144 = scmp.eq.s32.totalorder %s25, 0
      %p145 = por %p143, %p144
      %p146 = scmp.ne.s32.totalorder %s134, %s135
      %p147 = scmp.eq.s32.totalorder %s26, 1
      %p148 = por %p146, %p147
      %p150 = scmp.ne.s32.totalorder %s135, %s149
      %p151 = scmp.eq.s32.totalorder %s26, 0
      %p152 = por %p150, %p151
      %s154 = sadd.s32 %s153, 1
      %p157 = scmp.eq.s32.totalorder %s20, 1
      %p158 = scmp.ne.s32.totalorder %s153, %s155
      %p159 = scmp.eq.s32.totalorder %s20, 0
      %p160 = por %p158, %p159
      %p161 = scmp.ne.s32.totalorder %s153, %s155
      %p162 = scmp.eq.s32.totalorder %s25, 1
      %p163 = por %p161, %p162
      %p164 = scmp.ne.s32.totalorder %s155, %s156
      %p165 = scmp.eq.s32.totalorder %s25, 0
      %p166 = por %p164, %p165
      %p167 = scmp.ne.s32.totalorder %s155, %s156
      %p168 = scmp.eq.s32.totalorder %s26, 1
      %p169 = por %p167, %p168
      %p171 = scmp.ne.s32.totalorder %s156, %s170
      %p172 = scmp.eq.s32.totalorder %s26, 0
      %p173 = por %p171, %p172
      %s175 = sadd.s32 %s174, 1
      %p178 = scmp.eq.s32.totalorder %s20, 1
      %p179 = scmp.ne.s32.totalorder %s174, %s176
      %p180 = scmp.eq.s32.totalorder %s20, 0
      %p181 = por %p179, %p180
      %p182 = scmp.ne.s32.totalorder %s174, %s176
      %p183 = scmp.eq.s32.totalorder %s25, 1
      %p184 = por %p182, %p183
      %p185 = scmp.ne.s32.totalorder %s176, %s177
      %p186 = scmp.eq.s32.totalorder %s25, 0
      %p187 = por %p185, %p186
      %p188 = scmp.ne.s32.totalorder %s176, %s177
      %p189 = scmp.eq.s32.totalorder %s26, 1
      %p190 = por %p188, %p189
      %p192 = scmp.ne.s32.totalorder %s177, %s191
      %p193 = scmp.eq.s32.totalorder %s26, 0
      %p194 = por %p192, %p193
      %s196 = sadd.s32 %s195, 1
      %p199 = scmp.eq.s32.totalorder %s20, 1
      %p200 = scmp.ne.s32.totalorder %s195, %s197
      %p201 = scmp.eq.s32.totalorder %s20, 0
      %p202 = por %p200, %p201
      %p203 = scmp.ne.s32.totalorder %s195, %s197
      %p204 = scmp.eq.s32.totalorder %s25, 1
      %p205 = por %p203, %p204
      %p206 = scmp.ne.s32.totalorder %s197, %s198
      %p207 = scmp.eq.s32.totalorder %s25, 0
      %p208 = por %p206, %p207
      %p209 = scmp.ne.s32.totalorder %s197, %s198
      %p210 = scmp.eq.s32.totalorder %s26, 1
      %p211 = por %p209, %p210
      %p213 = scmp.ne.s32.totalorder %s198, %s212
      %p214 = scmp.eq.s32.totalorder %s26, 0
      %p215 = por %p213, %p214
      %s217 = sadd.s32 %s216, 1
      %p220 = scmp.eq.s32.totalorder %s20, 1
      %p221 = scmp.ne.s32.totalorder %s216, %s218
      %p222 = scmp.eq.s32.totalorder %s20, 0
      %p223 = por %p221, %p222
      %p224 = scmp.ne.s32.totalorder %s216, %s218
      %p225 = scmp.eq.s32.totalorder %s25, 1
      %p226 = por %p224, %p225
      %p227 = scmp.ne.s32.totalorder %s218, %s219
      %p228 = scmp.eq.s32.totalorder %s25, 0
      %p229 = por %p227, %p228
      %p230 = scmp.ne.s32.totalorder %s218, %s219
      %p231 = scmp.eq.s32.totalorder %s26, 1
      %p232 = por %p230, %p231
      %p234 = scmp.ne.s32.totalorder %s219, %s233
      %p235 = scmp.eq.s32.totalorder %s26, 0
      %p236 = por %p234, %p235
      %s238 = sadd.s32 %s237, 1
      %p241 = scmp.eq.s32.totalorder %s20, 1
      %p242 = scmp.ne.s32.totalorder %s237, %s239
      %p243 = scmp.eq.s32.totalorder %s20, 0
      %p244 = por %p242, %p243
      %p245 = scmp.ne.s32.totalorder %s237, %s239
      %p246 = scmp.eq.s32.totalorder %s25, 1
      %p247 = por %p245, %p246
      %p248 = scmp.ne.s32.totalorder %s239, %s240
      %p249 = scmp.eq.s32.totalorder %s25, 0
      %p250 = por %p248, %p249
      %p251 = scmp.ne.s32.totalorder %s239, %s240
      %p252 = scmp.eq.s32.totalorder %s26, 1
      %p253 = por %p251, %p252
      %p255 = scmp.ne.s32.totalorder %s240, %s254
      %p256 = scmp.eq.s32.totalorder %s26, 0
      %p257 = por %p255, %p256
      %s259 = sadd.s32 %s258, 1
      %p262 = scmp.eq.s32.totalorder %s20, 1
      %p263 = scmp.ne.s32.totalorder %s258, %s260
      %p264 = scmp.eq.s32.totalorder %s20, 0
      %p265 = por %p263, %p264
      %p266 = scmp.ne.s32.totalorder %s258, %s260
      %p267 = scmp.eq.s32.totalorder %s25, 1
      %p268 = por %p266, %p267
      %p269 = scmp.ne.s32.totalorder %s260, %s261
      %p270 = scmp.eq.s32.totalorder %s25, 0
      %p271 = por %p269, %p270
      %p272 = scmp.ne.s32.totalorder %s260, %s261
      %p273 = scmp.eq.s32.totalorder %s26, 1
      %p274 = por %p272, %p273
      %p276 = scmp.ne.s32.totalorder %s261, %s275
      %p277 = scmp.eq.s32.totalorder %s26, 0
      %p278 = por %p276, %p277
      %s279 = ssub.s32 %s20, %s27
      %p280 = scmp.eq.s32.totalorder %s279, 0
      %s282 = sadd.s32 %s281, 1
      %s283 = scalar_select %p280, %s281, %s282
      %p286 = pneg %p280
      %p287 = scmp.eq.s32.totalorder %s20, 1
      %p288 = por %p286, %p287
      %p289 = scmp.ne.s32.totalorder %s281, %s284
      %p290 = scmp.eq.s32.totalorder %s20, 0
      %p291 = por %p289, %p290
      %p292 = scmp.ne.s32.totalorder %s281, %s284
      %p293 = scmp.eq.s32.totalorder %s25, 1
      %p294 = por %p292, %p293
      %p295 = scmp.ne.s32.totalorder %s284, %s285
      %p296 = scmp.eq.s32.totalorder %s25, 0
      %p297 = por %p295, %p296
      %p298 = scmp.ne.s32.totalorder %s284, %s285
      %p299 = scmp.eq.s32.totalorder %s26, 1
      %p300 = por %p298, %p299
      %p302 = scmp.ne.s32.totalorder %s285, %s301
      %p303 = scmp.eq.s32.totalorder %s26, 0
      %p304 = por %p302, %p303
      %p305 = scmp.le.s32.totalorder 1, %s20
      %p306 = scmp.lt.s32.totalorder %s20, 3
      %p307 = pnand %p305, %p306
      %p308 = pneg %p307
      // Predicated region
      $region9: #{layers_fuser.1} parent=5 // pred_check
        _
      $region10: #{layers_fuser.1} parent=5 // pred_check_branch
        %310 = sbr.rel (%p307) target = $region12
      $region11: #{layers_fuser.1} parent=5 // pred_region
        %s311 = ssub.s32 %s20, 1
        // Predicated region
        $region13: #{layers_fuser.1} parent=11 // pred_check
          %p312 = pneg %p145
        $region14: #{layers_fuser.1} parent=11 // pred_check_branch
          %314 = sbr.rel (%p312) target = $region16
        $region15: #{layers_fuser.1} parent=11 // pred_region
          _
        $region16: #{layers_fuser.1} parent=11 // pred_fallthru
          _
        // Predicated region
        $region17: #{layers_fuser.1} parent=11 // pred_check
          %p315 = pneg %p166
        $region18: #{layers_fuser.1} parent=11 // pred_check_branch
          %317 = sbr.rel (%p315) target = $region20
        $region19: #{layers_fuser.1} parent=11 // pred_region
          _
        $region20: #{layers_fuser.1} parent=11 // pred_fallthru
          _
        // Predicated region
        $region21: #{layers_fuser.1} parent=11 // pred_check
          %p318 = pneg %p187
        $region22: #{layers_fuser.1} parent=11 // pred_check_branch
          %320 = sbr.rel (%p318) target = $region24
        $region23: #{layers_fuser.1} parent=11 // pred_region
          _
        $region24: #{layers_fuser.1} parent=11 // pred_fallthru
          _
        // Predicated region
        $region25: #{layers_fuser.1} parent=11 // pred_check
          %p321 = pneg %p208
        $region26: #{layers_fuser.1} parent=11 // pred_check_branch
          %323 = sbr.rel (%p321) target = $region28
        $region27: #{layers_fuser.1} parent=11 // pred_region
          _
        $region28: #{layers_fuser.1} parent=11 // pred_fallthru
          _
        // Predicated region
        $region29: #{layers_fuser.1} parent=11 // pred_check
          %p324 = pneg %p229
        $region30: #{layers_fuser.1} parent=11 // pred_check_branch
          %326 = sbr.rel (%p324) target = $region32
        $region31: #{layers_fuser.1} parent=11 // pred_region
          _
        $region32: #{layers_fuser.1} parent=11 // pred_fallthru
          _
        // Predicated region
        $region33: #{layers_fuser.1} parent=11 // pred_check
          %p327 = pneg %p250
        $region34: #{layers_fuser.1} parent=11 // pred_check_branch
          %329 = sbr.rel (%p327) target = $region36
        $region35: #{layers_fuser.1} parent=11 // pred_region
          _
        $region36: #{layers_fuser.1} parent=11 // pred_fallthru
          _
        // Predicated region
        $region37: #{layers_fuser.1} parent=11 // pred_check
          %p330 = pneg %p271
        $region38: #{layers_fuser.1} parent=11 // pred_check_branch
          %332 = sbr.rel (%p330) target = $region40
        $region39: #{layers_fuser.1} parent=11 // pred_region
          _
        $region40: #{layers_fuser.1} parent=11 // pred_fallthru
          _
      $region12: #{layers_fuser.1} parent=5 // pred_fallthru
        _
      %p333 = scmp.lt.s32.totalorder %s20, 2
      // Predicated region
      $region41: #{layers_fuser.1} parent=5 // pred_check
        %p334 = pneg %p333
      $region42: #{layers_fuser.1} parent=5 // pred_check_branch
        %336 = sbr.rel (%p334) target = $region44
      $region43: #{layers_fuser.1} parent=5 // pred_region
        // Predicated region
        $region45: #{layers_fuser.1} parent=43 // pred_check
          %p337 = pneg %p40
        $region46: #{layers_fuser.1} parent=43 // pred_check_branch
          %339 = sbr.rel (%p337) target = $region48
        $region47: #{layers_fuser.1} parent=43 // pred_region
          %s340 = smul.u32 2, %s20
          %p341 = scmp.lt.s32.totalorder %s340, 3
          %s342 = scalar_select %p341, %s340, 3
          %s343 = smul.addr %s342, 4
          %s344 = scalar_lea.vmem %s0, %s343
          %s345 = smul.u32 2, %s20
        $region48: #{layers_fuser.1} parent=43 // pred_fallthru
          _
        // Predicated region
        $region49: #{layers_fuser.1} parent=43 // pred_check
          %p346 = pneg %p66
        $region50: #{layers_fuser.1} parent=43 // pred_check_branch
          %348 = sbr.rel (%p346) target = $region52
        $region51: #{layers_fuser.1} parent=43 // pred_region
          %s349 = smul.u32 2, %s20
          %p350 = scmp.lt.s32.totalorder %s349, 3
          %s351 = scalar_select %p350, %s349, 3
          %s352 = smul.addr %s351, 4
          %s353 = scalar_lea.vmem %s1, %s352
          %s354 = smul.u32 2, %s20
        $region52: #{layers_fuser.1} parent=43 // pred_fallthru
          _
        // Predicated region
        $region53: #{layers_fuser.1} parent=43 // pred_check
          %p355 = pneg %p92
        $region54: #{layers_fuser.1} parent=43 // pred_check_branch
          %357 = sbr.rel (%p355) target = $region56
        $region55: #{layers_fuser.1} parent=43 // pred_region
          %s358 = smul.u32 2, %s20
          %p359 = scmp.lt.s32.totalorder %s358, 3
          %s360 = scalar_select %p359, %s358, 3
          %s361 = smul.addr %s360, 4
          %s362 = scalar_lea.vmem %s2, %s361
          %s363 = smul.u32 2, %s20
        $region56: #{layers_fuser.1} parent=43 // pred_fallthru
          _
        // Predicated region
        $region57: #{layers_fuser.1} parent=43 // pred_check
          %p364 = pneg %p118
        $region58: #{layers_fuser.1} parent=43 // pred_check_branch
          %366 = sbr.rel (%p364) target = $region60
        $region59: #{layers_fuser.1} parent=43 // pred_region
          %s367 = smul.u32 2, %s20
          %p368 = scmp.lt.s32.totalorder %s367, 3
          %s369 = scalar_select %p368, %s367, 3
          %s370 = smul.addr %s369, 4
          %s371 = scalar_lea.vmem %s3, %s370
          %s372 = smul.u32 2, %s20
        $region60: #{layers_fuser.1} parent=43 // pred_fallthru
          _
      $region44: #{layers_fuser.1} parent=5 // pred_fallthru
        _
      %p373 = scmp.le.s32.totalorder 1, %s20
      %p374 = scmp.lt.s32.totalorder %s20, 3
      %p375 = pnand %p373, %p374
      %p376 = pneg %p375
      // Predicated region
      $region61: #{layers_fuser.1} parent=5 // pred_check
        _
      $region62: #{layers_fuser.1} parent=5 // pred_check_branch
        %378 = sbr.rel (%p375) target = $region64
      $region63: #{layers_fuser.1} parent=5 // pred_region
        %s379 = ssub.s32 %s20, 1
        %s380 = smul.u32 2, %s25
        %p381 = scmp.lt.s32.totalorder %s380, 3
        %s382 = scalar_select %p381, %s380, 3
        %s383 = smul.addr %s382, 4
        %s384 = scalar_lea.vmem %s0, %s383
        %p385 = pneg %p46
        %p386 = pneg %p43
        %s387 = smul.u32 2, %s25
        %p388 = scmp.lt.s32.totalorder %s387, 3
        %s389 = scalar_select %p388, %s387, 3
        %s390 = smul.addr %s389, 4
        %s391 = scalar_lea.vmem %s1, %s390
        %p392 = pneg %p72
        %p393 = pneg %p69
        %s394 = smul.u32 2, %s25
        %p395 = scmp.lt.s32.totalorder %s394, 3
        %s396 = scalar_select %p395, %s394, 3
        %s397 = smul.addr %s396, 4
        %s398 = scalar_lea.vmem %s2, %s397
        %p399 = pneg %p98
        %p400 = pneg %p95
        %s401 = smul.u32 2, %s25
        %p402 = scmp.lt.s32.totalorder %s401, 3
        %s403 = scalar_select %p402, %s401, 3
        %s404 = smul.addr %s403, 4
        %s405 = scalar_lea.vmem %s3, %s404
        %p406 = pneg %p124
        %p407 = pneg %p121
        %p408 = pneg %p145
        %p409 = pneg %p142
        %p410 = pneg %p166
        %p411 = pneg %p163
        %p412 = pneg %p187
        %p413 = pneg %p184
        %p414 = pneg %p208
        %p415 = pneg %p205
        %p416 = pneg %p229
        %p417 = pneg %p226
        %p418 = pneg %p250
        %p419 = pneg %p247
        %p420 = pneg %p271
        %p421 = pneg %p268
        %p422 = pneg %p297
        %p423 = pneg %p294
        %s424 = sand.u32 %s284, 1
        %s425 = scalar_lea.sflag [#allocation3], %s424
        %s426 = sand.u32 %s284, 1
        %s427 = smul.addr %s426, 16
        %s428 = scalar_lea.vmem [#allocation2], %s427
        %s429 = smul.u32 2, %s25
        %p430 = scmp.lt.s32.totalorder %s429, 3
        %s431 = scalar_select %p430, %s429, 3
        %s432 = smul.addr %s431, 4
        %s433 = scalar_lea.vmem %s0, %s432
        %s434 = smul.u32 2, %s25
        %s435 = smul.u32 2, %s25
        %p436 = scmp.lt.s32.totalorder %s435, 3
        %s437 = scalar_select %p436, %s435, 3
        %s438 = smul.addr %s437, 4
        %s439 = scalar_lea.vmem %s1, %s438
        %s440 = smul.u32 2, %s25
        %s441 = smul.u32 2, %s25
        %p442 = scmp.lt.s32.totalorder %s441, 3
        %s443 = scalar_select %p442, %s441, 3
        %s444 = smul.addr %s443, 4
        %s445 = scalar_lea.vmem %s2, %s444
        %s446 = smul.u32 2, %s25
        %s447 = smul.u32 2, %s25
        %p448 = scmp.lt.s32.totalorder %s447, 3
        %s449 = scalar_select %p448, %s447, 3
        %s450 = smul.addr %s449, 4
        %s451 = scalar_lea.vmem %s3, %s450
        %s452 = smul.u32 2, %s25
        %s453 = smul.u32 2, %s25
        %v455 = vlaneseq
        %v456 = vand.u32 %v455, 127
        %v457 = vlaneseq
        %v458 = vshrl.u32 %v457, 7
        %v459 = vmul.u32 %v458, 8
        %vm460 = vcmp.ge.s32.totalorder %v456, %v459
        %v461 = vadd.s32 %v459, 8
        %vm462 = vcmp.lt.s32.totalorder %v456, %v461
        %vm463 = vmand %vm460, %vm462
        %v464 = vsel %vm463, 1.0, 0.0
        %v465 = vpack.c.bf16 %v464, %v464
        %v466 = vadd.s32 %v458, 8
        %v467 = vmul.u32 %v456, 8
        %vm468 = vcmp.ge.s32.totalorder %v458, %v467
        %vm469 = vcmp.ge.s32.totalorder %v466, %v467
        %v470 = vadd.s32 %v467, 8
        %vm471 = vcmp.lt.s32.totalorder %v458, %v470
        %vm472 = vcmp.lt.s32.totalorder %v466, %v470
        %vm473 = vmand %vm468, %vm471
        %vm474 = vmand %vm469, %vm472
        %v475 = vsel %vm473, 1.0, 0.0
        %v476 = vsel %vm474, 1.0, 0.0
        %v477 = vld [vmem:[%s4] sm:$0x1]
        %v478 = vld [vmem:[%s5] sm:$0xf]
        %v479 = vld [vmem:[%s6] sm:$0x1]
        %v481 = vlaneseq
        %v482 = vshrl.u32 %v481, 7
        %v483 = vsub.s32 0, %v482
        %v484 = vrot.slane %v479, %v483
        %v486 = vadd.f32 %v484, 0.0
        %v487 = vld [vmem:[%s433] sm:$0xf]
        %v488 = vld [vmem:[%s433 + $0x4] sm:$0xf]
        %v491 = vunpack.c.l.b16 %v487
        %v492 = vunpack.c.l.b16 %v488
        %v493 = vpack.c.b16 %v492, %v491
        %vm495 = vcmask 130048
        %v497 = vsel %vm495, %v465, 0
        %499 = vmatprep.subr.bf16.mxu0 0
        %500 = vmatpush1.bf16.msra.mxu0 0
        %501 = vmatprep.subr.bf16.mxu0 0
        %502 = vmatpush1.bf16.msra.mxu0 0
        %503 = vmatprep.subr.bf16.mxu0 0
        %504 = vmatpush1.bf16.msra.mxu0 0
        %505 = vmatprep.subr.bf16.mxu0 0
        %506 = vmatpush1.bf16.msra.mxu0 0
        %507 = vmatprep.subr.bf16.mxu0 0
        %508 = vmatpush1.bf16.msra.mxu0 0
        %509 = vmatprep.subr.bf16.mxu0 0
        %510 = vmatpush1.bf16.msra.mxu0 0
        %511 = vmatprep.subr.bf16.mxu0 0
        %512 = vmatpush1.bf16.msra.mxu0 0
        %513 = vmatprep.subr.bf16.mxu0 0
        %514 = vmatpush1.bf16.msra.mxu0 %v493
        %515 = vmatprep.subr.bf16.mxu0 0
        %516 = vmatpush2.bf16.msra.mxu0 0
        %517 = vmatprep.subr.bf16.mxu0 0
        %518 = vmatpush2.bf16.msra.mxu0 0
        %519 = vmatprep.subr.bf16.mxu0 0
        %520 = vmatpush2.bf16.msra.mxu0 0
        %521 = vmatprep.subr.bf16.mxu0 0
        %522 = vmatpush2.bf16.msra.mxu0 0
        %523 = vmatprep.subr.bf16.mxu0 0
        %524 = vmatpush2.bf16.msra.mxu0 0
        %525 = vmatprep.subr.bf16.mxu0 0
        %526 = vmatpush2.bf16.msra.mxu0 0
        %527 = vmatprep.subr.bf16.mxu0 0
        %528 = vmatpush2.bf16.msra.mxu0 0
        %529 = vmatprep.subr.bf16.mxu0 0
        %530 = vmatpush2.bf16.msra.mxu0 0
        %531 = vmatprep.mubr.bf16.mxu0 0
        %532 = vmatmul.mubr.bf16.gmra.mxu0 %v497
        %v533 = vpop.f32.mrf.mxu0
        %v534 = vadd.f32 0.0, %v533
        %v535 = vpop.f32.mrf.mxu0
        %v536 = vpop.f32.mrf.mxu0
        %v537 = vpop.f32.mrf.mxu0
        %538 = vdwg.mxu0
        %v540 = vlaneseq
        %v541 = vshrl.u32 %v540, 7
        %v542 = vsub.s32 0, %v541
        %v543 = vrot.slane %v477, %v542
        %v545 = vmul.f32 %v534, %v543
        %vm546 = vcmask 254976
        %v547 = vsel %vm546, %v545, 0.0
        %548 = vadd.xlane.f32.xlu0 %v547
        %v549 = vpop.xlane.xlu0 %548
        %v550 = vlaneseq
        %v551 = vshrl.u32 %v550, 7
        %v552 = vsub.s32 0, %v551
        %v553 = vrot.slane %v478, %v552
        %v554 = vmul.f32 %v549, %v553
        %v555 = vadd.f32 %v486, %v554
        %v556 = vld [vmem:[%s439] sm:$0xf]
        %v557 = vld [vmem:[%s439 + $0x4] sm:$0xf]
        %v560 = vunpack.c.l.b16 %v556
        %v561 = vunpack.c.l.b16 %v557
        %v562 = vpack.c.b16 %v561, %v560
        %564 = vmatprep.subr.bf16.mxu0 0
        %565 = vmatpush1.bf16.msra.mxu0 0
        %566 = vmatprep.subr.bf16.mxu0 0
        %567 = vmatpush1.bf16.msra.mxu0 0
        %568 = vmatprep.subr.bf16.mxu0 0
        %569 = vmatpush1.bf16.msra.mxu0 0
        %570 = vmatprep.subr.bf16.mxu0 0
        %571 = vmatpush1.bf16.msra.mxu0 0
        %572 = vmatprep.subr.bf16.mxu0 0
        %573 = vmatpush1.bf16.msra.mxu0 0
        %574 = vmatprep.subr.bf16.mxu0 0
        %575 = vmatpush1.bf16.msra.mxu0 0
        %576 = vmatprep.subr.bf16.mxu0 0
        %577 = vmatpush1.bf16.msra.mxu0 0
        %578 = vmatprep.subr.bf16.mxu0 0
        %579 = vmatpush1.bf16.msra.mxu0 %v562
        %580 = vmatprep.subr.bf16.mxu0 0
        %581 = vmatpush2.bf16.msra.mxu0 0
        %582 = vmatprep.subr.bf16.mxu0 0
        %583 = vmatpush2.bf16.msra.mxu0 0
        %584 = vmatprep.subr.bf16.mxu0 0
        %585 = vmatpush2.bf16.msra.mxu0 0
        %586 = vmatprep.subr.bf16.mxu0 0
        %587 = vmatpush2.bf16.msra.mxu0 0
        %588 = vmatprep.subr.bf16.mxu0 0
        %589 = vmatpush2.bf16.msra.mxu0 0
        %590 = vmatprep.subr.bf16.mxu0 0
        %591 = vmatpush2.bf16.msra.mxu0 0
        %592 = vmatprep.subr.bf16.mxu0 0
        %593 = vmatpush2.bf16.msra.mxu0 0
        %594 = vmatprep.subr.bf16.mxu0 0
        %595 = vmatpush2.bf16.msra.mxu0 0
        %596 = vmatprep.mubr.bf16.mxu0 0
        %597 = vmatmul.mubr.bf16.gmra.mxu0 %v497
        %v598 = vpop.f32.mrf.mxu0
        %v599 = vadd.f32 0.0, %v598
        %v600 = vpop.f32.mrf.mxu0
        %v601 = vpop.f32.mrf.mxu0
        %v602 = vpop.f32.mrf.mxu0
        %603 = vdwg.mxu0
        %v604 = vmul.f32 %v599, %v543
        %v605 = vsel %vm546, %v604, 0.0
        %606 = vadd.xlane.f32.xlu0 %v605
        %v607 = vpop.xlane.xlu0 %606
        %v608 = vlaneseq
        %v609 = vshrl.u32 %v608, 7
        %v610 = vsub.s32 1, %v609
        %v611 = vrot.slane %v478, %v610
        %v612 = vmul.f32 %v607, %v611
        %v613 = vadd.f32 %v555, %v612
        %v614 = vld [vmem:[%s445] sm:$0xf]
        %v615 = vld [vmem:[%s445 + $0x4] sm:$0xf]
        %v618 = vunpack.c.l.b16 %v614
        %v619 = vunpack.c.l.b16 %v615
        %v620 = vpack.c.b16 %v619, %v618
        %622 = vmatprep.subr.bf16.mxu0 0
        %623 = vmatpush1.bf16.msra.mxu0 0
        %624 = vmatprep.subr.bf16.mxu0 0
        %625 = vmatpush1.bf16.msra.mxu0 0
        %626 = vmatprep.subr.bf16.mxu0 0
        %627 = vmatpush1.bf16.msra.mxu0 0
        %628 = vmatprep.subr.bf16.mxu0 0
        %629 = vmatpush1.bf16.msra.mxu0 0
        %630 = vmatprep.subr.bf16.mxu0 0
        %631 = vmatpush1.bf16.msra.mxu0 0
        %632 = vmatprep.subr.bf16.mxu0 0
        %633 = vmatpush1.bf16.msra.mxu0 0
        %634 = vmatprep.subr.bf16.mxu0 0
        %635 = vmatpush1.bf16.msra.mxu0 0
        %636 = vmatprep.subr.bf16.mxu0 0
        %637 = vmatpush1.bf16.msra.mxu0 %v620
        %638 = vmatprep.subr.bf16.mxu0 0
        %639 = vmatpush2.bf16.msra.mxu0 0
        %640 = vmatprep.subr.bf16.mxu0 0
        %641 = vmatpush2.bf16.msra.mxu0 0
        %642 = vmatprep.subr.bf16.mxu0 0
        %643 = vmatpush2.bf16.msra.mxu0 0
        %644 = vmatprep.subr.bf16.mxu0 0
        %645 = vmatpush2.bf16.msra.mxu0 0
        %646 = vmatprep.subr.bf16.mxu0 0
        %647 = vmatpush2.bf16.msra.mxu0 0
        %648 = vmatprep.subr.bf16.mxu0 0
        %649 = vmatpush2.bf16.msra.mxu0 0
        %650 = vmatprep.subr.bf16.mxu0 0
        %651 = vmatpush2.bf16.msra.mxu0 0
        %652 = vmatprep.subr.bf16.mxu0 0
        %653 = vmatpush2.bf16.msra.mxu0 0
        %654 = vmatprep.mubr.bf16.mxu0 0
        %655 = vmatmul.mubr.bf16.gmra.mxu0 %v497
        %v656 = vpop.f32.mrf.mxu0
        %v657 = vadd.f32 0.0, %v656
        %v658 = vpop.f32.mrf.mxu0
        %v659 = vpop.f32.mrf.mxu0
        %v660 = vpop.f32.mrf.mxu0
        %661 = vdwg.mxu0
        %v662 = vmul.f32 %v657, %v543
        %v663 = vsel %vm546, %v662, 0.0
        %664 = vadd.xlane.f32.xlu0 %v663
        %v665 = vpop.xlane.xlu0 %664
        %v666 = vlaneseq
        %v667 = vshrl.u32 %v666, 7
        %v668 = vsub.s32 2, %v667
        %v669 = vrot.slane %v478, %v668
        %v670 = vmul.f32 %v665, %v669
        %v671 = vadd.f32 %v613, %v670
        %v672 = vld [vmem:[%s451] sm:$0xf]
        %v673 = vld [vmem:[%s451 + $0x4] sm:$0xf]
        %v676 = vunpack.c.l.b16 %v672
        %v677 = vunpack.c.l.b16 %v673
        %v678 = vpack.c.b16 %v677, %v676
        %680 = vmatprep.subr.bf16.mxu0 0
        %681 = vmatpush1.bf16.msra.mxu0 0
        %682 = vmatprep.subr.bf16.mxu0 0
        %683 = vmatpush1.bf16.msra.mxu0 0
        %684 = vmatprep.subr.bf16.mxu0 0
        %685 = vmatpush1.bf16.msra.mxu0 0
        %686 = vmatprep.subr.bf16.mxu0 0
        %687 = vmatpush1.bf16.msra.mxu0 0
        %688 = vmatprep.subr.bf16.mxu0 0
        %689 = vmatpush1.bf16.msra.mxu0 0
        %690 = vmatprep.subr.bf16.mxu0 0
        %691 = vmatpush1.bf16.msra.mxu0 0
        %692 = vmatprep.subr.bf16.mxu0 0
        %693 = vmatpush1.bf16.msra.mxu0 0
        %694 = vmatprep.subr.bf16.mxu0 0
        %695 = vmatpush1.bf16.msra.mxu0 %v678
        %696 = vmatprep.subr.bf16.mxu0 0
        %697 = vmatpush2.bf16.msra.mxu0 0
        %698 = vmatprep.subr.bf16.mxu0 0
        %699 = vmatpush2.bf16.msra.mxu0 0
        %700 = vmatprep.subr.bf16.mxu0 0
        %701 = vmatpush2.bf16.msra.mxu0 0
        %702 = vmatprep.subr.bf16.mxu0 0
        %703 = vmatpush2.bf16.msra.mxu0 0
        %704 = vmatprep.subr.bf16.mxu0 0
        %705 = vmatpush2.bf16.msra.mxu0 0
        %706 = vmatprep.subr.bf16.mxu0 0
        %707 = vmatpush2.bf16.msra.mxu0 0
        %708 = vmatprep.subr.bf16.mxu0 0
        %709 = vmatpush2.bf16.msra.mxu0 0
        %710 = vmatprep.subr.bf16.mxu0 0
        %711 = vmatpush2.bf16.msra.mxu0 0
        %712 = vmatprep.mubr.bf16.mxu0 0
        %713 = vmatmul.mubr.bf16.gmra.mxu0 %v497
        %v714 = vpop.f32.mrf.mxu0
        %v715 = vadd.f32 0.0, %v714
        %v716 = vpop.f32.mrf.mxu0
        %v717 = vpop.f32.mrf.mxu0
        %v718 = vpop.f32.mrf.mxu0
        %719 = vdwg.mxu0
        %v720 = vmul.f32 %v715, %v543
        %v721 = vsel %vm546, %v720, 0.0
        %722 = vadd.xlane.f32.xlu0 %v721
        %v723 = vpop.xlane.xlu0 %722
        %v724 = vlaneseq
        %v725 = vshrl.u32 %v724, 7
        %v726 = vsub.s32 3, %v725
        %v727 = vrot.slane %v478, %v726
        %v728 = vmul.f32 %v723, %v727
        %v729 = vadd.f32 %v671, %v728
        %v730 = vmax.f32 %v729, 0.0
        %v731 = vld [vmem:[%s8] sm:$0x1]
        %v733 = vlaneseq
        %v734 = vshrl.u32 %v733, 7
        %v735 = vsub.s32 0, %v734
        %v736 = vrot.slane %v731, %v735
        %v738 = vadd.f32 %v736, 0.0
        %v739 = vld [vmem:[%s7] sm:$0x3]
        %741 = vset.pattern.permute.xlu0 0
        %742 = vperm.xlu0 %741, %v730
        %v743 = vpop.permute.xlu0 %742
        %v745 = vlaneseq
        %v746 = vshrl.u32 %v745, 7
        %v747 = vsub.s32 0, %v746
        %v748 = vrot.slane %v739, %v747
        %v749 = vmul.f32 %v743, %v748
        %v750 = vadd.f32 %v738, %v749
        %751 = vset.pattern.permute.xlu0 1
        %752 = vperm.xlu0 %751, %v730
        %v753 = vpop.permute.xlu0 %752
        %v755 = vlaneseq
        %v756 = vshrl.u32 %v755, 7
        %v757 = vsub.s32 1, %v756
        %v758 = vrot.slane %v739, %v757
        %v759 = vmul.f32 %v753, %v758
        %v760 = vadd.f32 %v750, %v759
        %v761 = vxor.u32 %v760, 2147483648
        %v762 = vmul.f32 %v761, 1.442695
        %v763 = vpow.pop %v762
        %v764 = vadd.f32 %v763, 1.0
        %v765 = vrcp.pop %v764
        %v766 = vmul.f32 1.0, %v765
        %vm767 = vcmask 15360
        %v769 = vsel %vm767, %v475, 0
        %v772 = vsel %vm767, %v476, 0
        %vm774 = vcmask 1041408
        %v776 = vsel %vm774, %v766, 0
        %778 = vmatprep.subr.mxu0 0.0
        %779 = vmatpush1.msra.mxu0 0.0
        %780 = vmatprep.subr.mxu0 0.0
        %781 = vmatpush1.msra.mxu0 0.0
        %782 = vmatprep.subr.mxu0 0.0
        %783 = vmatpush1.msra.mxu0 0.0
        %784 = vmatprep.subr.mxu0 0.0
        %785 = vmatpush1.msra.mxu0 0.0
        %786 = vmatprep.subr.mxu0 0.0
        %787 = vmatpush1.msra.mxu0 0.0
        %788 = vmatprep.subr.mxu0 0.0
        %789 = vmatpush1.msra.mxu0 0.0
        %790 = vmatprep.subr.mxu0 0.0
        %791 = vmatpush1.msra.mxu0 0.0
        %792 = vmatprep.subr.mxu0 0.0
        %793 = vmatpush1.msra.mxu0 0.0
        %794 = vmatprep.subr.mxu0 0.0
        %795 = vmatpush1.msra.mxu0 0.0
        %796 = vmatprep.subr.mxu0 0.0
        %797 = vmatpush1.msra.mxu0 0.0
        %798 = vmatprep.subr.mxu0 0.0
        %799 = vmatpush1.msra.mxu0 0.0
        %800 = vmatprep.subr.mxu0 0.0
        %801 = vmatpush1.msra.mxu0 0.0
        %802 = vmatprep.subr.mxu0 0.0
        %803 = vmatpush1.msra.mxu0 0.0
        %804 = vmatprep.subr.mxu0 0.0
        %805 = vmatpush1.msra.mxu0 0.0
        %806 = vmatprep.subr.mxu0 0.0
        %807 = vmatpush1.msra.mxu0 0.0
        %808 = vmatprep.subr.mxu0 0.0
        %809 = vmatpush1.msra.mxu0 %v776
        %810 = vmatprep.subr.mxu0 0.0
        %811 = vmatpush2.msra.mxu0 0.0
        %812 = vmatprep.subr.mxu0 0.0
        %813 = vmatpush2.msra.mxu0 0.0
        %814 = vmatprep.subr.mxu0 0.0
        %815 = vmatpush2.msra.mxu0 0.0
        %816 = vmatprep.subr.mxu0 0.0
        %817 = vmatpush2.msra.mxu0 0.0
        %818 = vmatprep.subr.mxu0 0.0
        %819 = vmatpush2.msra.mxu0 0.0
        %820 = vmatprep.subr.mxu0 0.0
        %821 = vmatpush2.msra.mxu0 0.0
        %822 = vmatprep.subr.mxu0 0.0
        %823 = vmatpush2.msra.mxu0 0.0
        %824 = vmatprep.subr.mxu0 0.0
        %825 = vmatpush2.msra.mxu0 0.0
        %826 = vmatprep.subr.mxu0 0.0
        %827 = vmatpush2.msra.mxu0 0.0
        %828 = vmatprep.subr.mxu0 0.0
        %829 = vmatpush2.msra.mxu0 0.0
        %830 = vmatprep.subr.mxu0 0.0
        %831 = vmatpush2.msra.mxu0 0.0
        %832 = vmatprep.subr.mxu0 0.0
        %833 = vmatpush2.msra.mxu0 0.0
        %834 = vmatprep.subr.mxu0 0.0
        %835 = vmatpush2.msra.mxu0 0.0
        %836 = vmatprep.subr.mxu0 0.0
        %837 = vmatpush2.msra.mxu0 0.0
        %838 = vmatprep.subr.mxu0 0.0
        %839 = vmatpush2.msra.mxu0 0.0
        %840 = vmatprep.subr.mxu0 0.0
        %841 = vmatpush2.msra.mxu0 0.0
        %842 = vmatprep.mubr.f32.mxu0 0.0
        %843 = vmatmul.mubr.f32.gmra.mxu0 %v769
        %v844 = vpop.f32.mrf.mxu0
        %v845 = vadd.f32 0.0, %v844
        %v846 = vpop.f32.mrf.mxu0
        %847 = vmatprep.mubr.f32.mxu0 0.0
        %848 = vmatmul.mubr.f32.gmra.mxu0 %v772
        %v849 = vpop.f32.mrf.mxu0
        %v850 = vadd.f32 0.0, %v849
        %v851 = vpop.f32.mrf.mxu0
        %852 = vdwg.mxu0
        %v853 = vunpack.c.l.bf16 %v487
        %v854 = vunpack.c.l.bf16 %v488
        %856 = vset.pattern.permute.xlu0 0
        %857 = vperm.xlu0 %856, %v845
        %v858 = vpop.permute.xlu0 %857
        %861 = vset.pattern.permute.xlu0 0
        %862 = vperm.xlu0 %861, %v850
        %v863 = vpop.permute.xlu0 %862
        %v865 = vmul.f32 %v853, %v858
        %v866 = vmul.f32 %v854, %v863
        %v867 = vadd.f32 %v865, 0.0
        %v868 = vadd.f32 %v866, 0.0
        %v869 = vunpack.c.l.bf16 %v556
        %v870 = vunpack.c.l.bf16 %v557
        %871 = vset.pattern.permute.xlu0 1
        %872 = vperm.xlu0 %871, %v845
        %v873 = vpop.permute.xlu0 %872
        %875 = vset.pattern.permute.xlu0 1
        %876 = vperm.xlu0 %875, %v850
        %v877 = vpop.permute.xlu0 %876
        %v879 = vmul.f32 %v869, %v873
        %v880 = vmul.f32 %v870, %v877
        %v881 = vadd.f32 %v867, %v879
        %v882 = vadd.f32 %v868, %v880
        %v883 = vunpack.c.l.bf16 %v614
        %v884 = vunpack.c.l.bf16 %v615
        %885 = vset.pattern.permute.xlu0 2
        %886 = vperm.xlu0 %885, %v845
        %v887 = vpop.permute.xlu0 %886
        %889 = vset.pattern.permute.xlu0 2
        %890 = vperm.xlu0 %889, %v850
        %v891 = vpop.permute.xlu0 %890
        %v893 = vmul.f32 %v883, %v887
        %v894 = vmul.f32 %v884, %v891
        %v895 = vadd.f32 %v881, %v893
        %v896 = vadd.f32 %v882, %v894
        %v897 = vunpack.c.l.bf16 %v672
        %v898 = vunpack.c.l.bf16 %v673
        %899 = vset.pattern.permute.xlu0 3
        %900 = vperm.xlu0 %899, %v845
        %v901 = vpop.permute.xlu0 %900
        %903 = vset.pattern.permute.xlu0 3
        %904 = vperm.xlu0 %903, %v850
        %v905 = vpop.permute.xlu0 %904
        %v907 = vmul.f32 %v897, %v901
        %v908 = vmul.f32 %v898, %v905
        %v909 = vadd.f32 %v895, %v907
        %v910 = vadd.f32 %v896, %v908
        %v911 = vpack.c.bf16 %v910, %v909
        %v912 = vld [vmem:[%s9] sm:$0xf]
        %v913 = vld [vmem:[%s9 + $0x4] sm:$0xf]
        %v914 = vld [vmem:[%s9 + $0x8] sm:$0xf]
        %v915 = vld [vmem:[%s9 + $0xc] sm:$0xf]
        %v916 = vld [vmem:[%s10] sm:$0x1]
        %v918 = vlaneseq
        %v919 = vshrl.u32 %v918, 7
        %v920 = vsub.s32 0, %v919
        %v921 = vrot.slane %v916, %v920
        %v927 = vunpack.c.l.b16 %v912
        %v928 = vunpack.c.l.b16 %v913
        %v929 = vunpack.c.l.b16 %v914
        %v930 = vunpack.c.l.b16 %v915
        %v931 = vpack.c.b16 %v928, %v927
        %v932 = vpack.c.b16 %v930, %v929
        %vm935 = vcmask 261120
        %v937 = vsel %vm935, %v911, 0
        %939 = vmatprep.subr.bf16.mxu0 0
        %940 = vmatpush1.bf16.msra.mxu0 0
        %941 = vmatprep.subr.bf16.mxu0 0
        %942 = vmatpush1.bf16.msra.mxu0 0
        %943 = vmatprep.subr.bf16.mxu0 0
        %944 = vmatpush1.bf16.msra.mxu0 0
        %945 = vmatprep.subr.bf16.mxu0 0
        %946 = vmatpush1.bf16.msra.mxu0 0
        %947 = vmatprep.subr.bf16.mxu0 0
        %948 = vmatpush1.bf16.msra.mxu0 0
        %949 = vmatprep.subr.bf16.mxu0 0
        %950 = vmatpush1.bf16.msra.mxu0 0
        %951 = vmatprep.subr.bf16.mxu0 0
        %952 = vmatpush1.bf16.msra.mxu0 %v932
        %953 = vmatprep.subr.bf16.mxu0 0
        %954 = vmatpush1.bf16.msra.mxu0 %v931
        %955 = vmatprep.subr.bf16.mxu0 0
        %956 = vmatpush2.bf16.msra.mxu0 0
        %957 = vmatprep.subr.bf16.mxu0 0
        %958 = vmatpush2.bf16.msra.mxu0 0
        %959 = vmatprep.subr.bf16.mxu0 0
        %960 = vmatpush2.bf16.msra.mxu0 0
        %961 = vmatprep.subr.bf16.mxu0 0
        %962 = vmatpush2.bf16.msra.mxu0 0
        %963 = vmatprep.subr.bf16.mxu0 0
        %964 = vmatpush2.bf16.msra.mxu0 0
        %965 = vmatprep.subr.bf16.mxu0 0
        %966 = vmatpush2.bf16.msra.mxu0 0
        %967 = vmatprep.subr.bf16.mxu0 0
        %968 = vmatpush2.bf16.msra.mxu0 0
        %969 = vmatprep.subr.bf16.mxu0 0
        %970 = vmatpush2.bf16.msra.mxu0 0
        %971 = vmatprep.mubr.bf16.mxu0 0
        %972 = vmatmul.mubr.bf16.gmra.mxu0 %v937
        %v973 = vpop.f32.mrf.mxu0
        %v974 = vadd.f32 %v921, %v973
        %v975 = vpop.f32.mrf.mxu0
        %v976 = vpop.f32.mrf.mxu0
        %v977 = vadd.f32 %v921, %v976
        %v978 = vpop.f32.mrf.mxu0
        %979 = vdwg.mxu0
        %980 = vst [vmem:[%s428] sm:$0xff] %v974
        %981 = vst [vmem:[%s428 + $0x8] sm:$0xff] %v977
        %s982 = sand.u32 %s284, 1
        %s983 = scalar_lea.sflag [#allocation3], %s982
        %s984 = sand.u32 %s284, 1
        %s985 = smul.addr %s984, 16
        %s986 = scalar_lea.vmem [#allocation2], %s985
        // Predicated region
        $region65: #{layers_fuser.1} parent=63 // pred_check
          %p987 = pneg %p294
        $region66: #{layers_fuser.1} parent=63 // pred_check_branch
          %989 = sbr.rel (%p987) target = $region68
        $region67: #{layers_fuser.1} parent=63 // pred_region
          %s990 = smul.u32 2, %s25
          %s992 = ssub.s32 256, 256
          %993 = vsyncadd %s983, %s992
          %s994 = smul.addr %s990, 128
          %s995 = scalar_lea.hbm %s11, %s994
          %s996 = sshll.u32 %s986, 4
          %s997 = int_to_ptr.vmem [resolvable:$true] %s996
          %1002 = dma.vmem_to_hbm [thread:$0]  %s997, 256, %s995, %s983, 128, 128, 8
        $region68: #{layers_fuser.1} parent=63 // pred_fallthru
          _
      $region64: #{layers_fuser.1} parent=5 // pred_fallthru
        _
      %p1003 = scmp.le.s32.totalorder 2, %s20
      // Predicated region
      $region69: #{layers_fuser.1} parent=5 // pred_check
        %p1004 = pneg %p1003
      $region70: #{layers_fuser.1} parent=5 // pred_check_branch
        %1006 = sbr.rel (%p1004) target = $region72
      $region71: #{layers_fuser.1} parent=5 // pred_region
        %s1007 = ssub.s32 %s20, 2
        // Predicated region
        $region73: #{layers_fuser.1} parent=71 // pred_check
          %p1008 = pneg %p300
        $region74: #{layers_fuser.1} parent=71 // pred_check_branch
          %1010 = sbr.rel (%p1008) target = $region76
        $region75: #{layers_fuser.1} parent=71 // pred_region
          %s1011 = sand.u32 %s285, 1
          %s1012 = scalar_lea.sflag [#allocation3], %s1011
          %s1013 = sand.u32 %s285, 1
          %s1014 = smul.addr %s1013, 16
          %s1015 = scalar_lea.vmem [#allocation2], %s1014
          %1016 = dma.done %s1012, 256
        $region76: #{layers_fuser.1} parent=71 // pred_fallthru
          _
      $region72: #{layers_fuser.1} parent=5 // pred_fallthru
        _
    $region6: #{layers_fuser.1} parent=1 // loop_footer
      %s24 = sadd.s32 1, %s20
    $region7: #{layers_fuser.1} parent=1 // loop_footer_branch
      %19 = sbr.rel target = $region3
    $region8: #{layers_fuser.1} parent=1 // loop_exit
      _
    %1017 = vsyncpa [#allocation3], 1
    %s1018 = scalar_lea.sflag [#allocation3], 1
    %1019 = vsyncpa %s1018, 1

</llo_original>
